<compile_context>
chip_gen: v7x
topology: tpu7x:2x2x1
jax: 0.10.0
libtpu: 0.0.40
codegen_flags: <defaults>
</compile_context>

<pallas_src>
import jax
import jax.numpy as jnp
import numpy as np
from jax.experimental import pallas as pl
from jax.experimental.pallas import tpu as pltpu

NEG_SLOPE = 0.2  # nn.LeakyReLU(0.2)


def _encoder_kernel(seq_ref, score_ref, w_hyp_ref, b_hyp_ref,
                    w_fc_ref, w_agg_t_ref, bias_ref, out_ref):
    # One grid step == one block of Bt batch elements (edge block masked by Pallas).
    score = score_ref[...].astype(jnp.float32)            # (Bt, N)

    # softmax over the sequence axis (N on lanes, Bt on sublanes)
    m = jnp.max(score, axis=-1, keepdims=True)
    e = jnp.exp(score - m)
    s = e * pl.reciprocal(jnp.sum(e, axis=-1, keepdims=True), approx=True)  # (Bt, N)

    # hypernet: Linear(1 -> H) applied to s[..., None], then abs()  (f32 on VPU)
    #   hyp[b, n, g] = | s[b, n] * W_hyp[g] + b_hyp[g] |
    hyp = jnp.abs(s[:, :, None] * w_hyp_ref[...][None]
                  + b_hyp_ref[...][None])                  # (Bt, N, H) f32

    # x = sequence_emb.transpose(1, 2) -> (Bt, H, N); matmul(x, hyp) -> (Bt, H, H)
    # bf16 MXU operands, f32 accumulation.
    seq_bf = seq_ref[...].astype(jnp.bfloat16)             # (Bt, N, H)
    hyp_bf = hyp.astype(jnp.bfloat16)
    out1 = jnp.einsum("bnh,bng->bhg", seq_bf, hyp_bf,
                      preferred_element_type=jnp.float32)  # (Bt, H, H) f32
    out1 = jnp.where(out1 > 0, out1, NEG_SLOPE * out1)     # LeakyReLU(0.2)

    # hyper_fc (weight only): out2[b, h] = sum_g out1[b, h, g] * w_fc[g]
    # (the hyper_fc bias is folded into `bias_ref` below, post W_agg)
    out2 = jnp.sum(out1 * w_fc_ref[...][None], axis=-1)    # (Bt, H) f32

    # W_agg (no bias, pre-transposed to (H_in, H_out)):
    #   out3[b, k] = sum_h out2[b, h] * W_agg[k, h] + b_fc * sum_h W_agg[k, h]
    out3 = jnp.einsum("bh,hk->bk", out2.astype(jnp.bfloat16), w_agg_t_ref[...],
                      preferred_element_type=jnp.float32)  # (Bt, H) f32
    out3 = out3 + bias_ref[...]                            # (1, H) broadcast

    out_ref[...] = out3.astype(out_ref.dtype)


def _round_up(x, m):
    return ((x + m - 1) // m) * m


def transformer_encoder_forward(user_emb, sequence_emb, score, params,
                                block_b=256, vmem_limit_mb=32):
    # user_emb is accepted to match the PyTorch signature but is unused by
    # this forward branch (exactly like the reference module).
    del user_emb
    B, N, H = sequence_emb.shape
    if score.ndim != 2:
        score = score.reshape(score.shape[0], -1)

    # --- one-time weight prep (host/XLA side, tiny arrays) -------------------
    w_hyp = params["hypernet_w"].reshape(1, H).astype(jnp.float32)   # torch (H,1) -> row
    b_hyp = params["hypernet_b"].reshape(1, H).astype(jnp.float32)
    w_fc = params["hyper_fc_w"].reshape(1, H).astype(jnp.float32)    # torch (1,H)
    b_fc = params["hyper_fc_b"].reshape(()).astype(jnp.float32)
    w_agg = params["W_agg_w"].astype(jnp.float32)                    # (H_out, H_in)
    w_agg_t = w_agg.T.astype(jnp.bfloat16)                           # (H_in, H_out)
    # hyper_fc bias folded through W_agg: bias[k] = b_fc * sum_h W_agg[k, h]
    bias = (b_fc * jnp.sum(w_agg, axis=1)).reshape(1, H).astype(jnp.float32)

    # Batch tile: multiple of 8 (sublane), capped at block_b. No host-side pad:
    # grid = cdiv(B, Bt) and Pallas masks the edge block's output writes.
    Bt = min(_round_up(block_b, 8), _round_up(B, 8))
    grid = (pl.cdiv(B, Bt),)

    out = pl.pallas_call(
        _encoder_kernel,
        out_shape=jax.ShapeDtypeStruct((B, H), sequence_emb.dtype),
        grid_spec=pltpu.PrefetchScalarGridSpec(
            num_scalar_prefetch=0,
            grid=grid,
            in_specs=[
                pl.BlockSpec((Bt, N, H), lambda i: (i, 0, 0)),   # sequence_emb
                pl.BlockSpec((Bt, N), lambda i: (i, 0)),         # score
                pl.BlockSpec((1, H), lambda i: (0, 0)),          # hypernet W (row)
                pl.BlockSpec((1, H), lambda i: (0, 0)),          # hypernet b
                pl.BlockSpec((1, H), lambda i: (0, 0)),          # hyper_fc W
                pl.BlockSpec((H, H), lambda i: (0, 0)),          # W_agg^T (bf16)
                pl.BlockSpec((1, H), lambda i: (0, 0)),          # folded output bias
            ],
            out_specs=pl.BlockSpec((Bt, H), lambda i: (i, 0)),
        ),
        compiler_params=pltpu.CompilerParams(
            dimension_semantics=("parallel",),
            vmem_limit_bytes=int(vmem_limit_mb) * 1024 * 1024),
    )(sequence_emb, score, w_hyp, b_hyp, w_fc, w_agg_t, bias)
    return out


def reference_forward(sequence_emb, score, params):
    """Pure-JAX f32 reference of the same 'multi_user' branch (for validation)."""
    B, N, H = sequence_emb.shape
    s = jax.nn.softmax(score, axis=-1)                                   # (B, N)
    hyp = jnp.abs(s[..., None] * params["hypernet_w"].reshape(1, 1, H)
                  + params["hypernet_b"].reshape(1, 1, H))               # (B, N, H)
    x = jnp.swapaxes(sequence_emb, 1, 2)                                 # (B, H, N)
    out1 = jnp.einsum("bhn,bng->bhg", x, hyp)
    out1 = jnp.where(out1 > 0, out1, NEG_SLOPE * out1)
    out2 = jnp.einsum("bhg,g->bh", out1, params["hyper_fc_w"].reshape(H)) \
        + params["hyper_fc_b"][0]
    out3 = jnp.einsum("ki,bi->bk", params["W_agg_w"], out2)
    return out3


def init_params(key, hidden_dim):
    ks = jax.random.split(key, 5)
    scale = 0.1
    return {
        "hypernet_w": scale * jax.random.normal(ks[0], (hidden_dim, 1), jnp.float32),
        "hypernet_b": scale * jax.random.normal(ks[1], (hidden_dim,), jnp.float32),
        "hyper_fc_w": scale * jax.random.normal(ks[2], (1, hidden_dim), jnp.float32),
        "hyper_fc_b": scale * jax.random.normal(ks[3], (1,), jnp.float32),
        "W_agg_w": scale * jax.random.normal(ks[4], (hidden_dim, hidden_dim), jnp.float32),
    }


if __name__ == "__main__":
    N, H = 8, 32   # maxlen, hidden_dim (hidden_dim % attend_heads == 0)

    key = jax.random.PRNGKey(0)
    k_seq, k_score, k_user, k_par = jax.random.split(key, 4)
    params = init_params(k_par, H)

    # --- small-shape check (module-sized): B = 2 ----------------------------
    B = 2
    sequence_emb = jax.random.normal(k_seq, (B, N, H), jnp.float32)
    score = jax.random.normal(k_score, (B, N), jnp.float32)
    user_emb = jax.random.normal(k_user, (B, H), jnp.float32)   # unused by this branch

    out = transformer_encoder_forward(user_emb, sequence_emb, score, params)
    out = jax.block_until_ready(out)
    ref = jax.block_until_ready(reference_forward(sequence_emb, score, params))
    assert out.shape == (B, H)
    assert np.allclose(np.asarray(out), np.asarray(ref), rtol=2e-2, atol=2e-2)

    # --- multi-step-grid + ragged-edge check: B = 20 with Bt = 8 ------------
    # (3 grid steps; last block covers rows 16..23 -> masked edge, no jnp.pad)
    B2 = 20
    k_seq2, k_score2 = jax.random.split(jax.random.PRNGKey(1), 2)
    seq2 = jax.random.normal(k_seq2, (B2, N, H), jnp.float32)
    score2 = jax.random.normal(k_score2, (B2, N), jnp.float32)
    out2 = jax.block_until_ready(
        transformer_encoder_forward(None, seq2, score2, params, block_b=8))
    ref2 = jax.block_until_ready(reference_forward(seq2, score2, params))
    assert out2.shape == (B2, H)
    assert np.allclose(np.asarray(out2), np.asarray(ref2), rtol=2e-2, atol=2e-2)

    print("KERNEL_OK")
</pallas_src>

<mosaic_0001>
module attributes {stable_mosaic.version = 11 : i64} {
  func.func @_encoder_kernel(%arg0: i32, %arg1: memref<8x8x32xf32, #tpu.memory_space<vmem>>, %arg2: memref<8x8xf32, #tpu.memory_space<vmem>>, %arg3: memref<1x32xf32, #tpu.memory_space<vmem>>, %arg4: memref<1x32xf32, #tpu.memory_space<vmem>>, %arg5: memref<1x32xf32, #tpu.memory_space<vmem>>, %arg6: memref<32x32xbf16, #tpu.memory_space<vmem>>, %arg7: memref<1x32xf32, #tpu.memory_space<vmem>>, %arg8: memref<8x32xf32, #tpu.memory_space<vmem>>) attributes {dimension_semantics = [#tpu.dimension_semantics<parallel>], iteration_bounds = array<i64: 1>, scalar_prefetch = 0 : i64, scratch_operands = 0 : i64, tpu.core_type = #tpu.core_type<tc>, window_params = [{transform_indices = @transform_0, window_bounds = array<i64: 8, 8, 32>}, {transform_indices = @transform_1, window_bounds = array<i64: 8, 8>}, {pipeline_mode = #tpu.pipeline_mode<synchronous>, transform_indices = @transform_2, window_bounds = array<i64: 1, 32>}, {pipeline_mode = #tpu.pipeline_mode<synchronous>, transform_indices = @transform_3, window_bounds = array<i64: 1, 32>}, {pipeline_mode = #tpu.pipeline_mode<synchronous>, transform_indices = @transform_4, window_bounds = array<i64: 1, 32>}, {pipeline_mode = #tpu.pipeline_mode<synchronous>, transform_indices = @transform_5, window_bounds = array<i64: 32, 32>}, {pipeline_mode = #tpu.pipeline_mode<synchronous>, transform_indices = @transform_6, window_bounds = array<i64: 1, 32>}, {transform_indices = @transform_7, window_bounds = array<i64: 8, 32>}]} {
    %c0 = arith.constant 0 : index
    %c0_0 = arith.constant 0 : index
    %0 = vector.load %arg2[%c0, %c0_0] : memref<8x8xf32, #tpu.memory_space<vmem>>, vector<8x8xf32>
    %cst = arith.constant dense<0xFF800000> : vector<8xf32>
    %1 = vector.multi_reduction <maximumf>, %0, %cst [1] : vector<8x8xf32> to vector<8xf32>
    %2 = vector.shape_cast %1 : vector<8xf32> to vector<8x1xf32>
    %3 = vector.broadcast %2 : vector<8x1xf32> to vector<8x8xf32>
    %4 = arith.subf %0, %3 : vector<8x8xf32>
    %5 = math.exp %4 : vector<8x8xf32>
    %cst_1 = arith.constant dense<0.000000e+00> : vector<8xf32>
    %6 = vector.multi_reduction <add>, %5, %cst_1 [1] : vector<8x8xf32> to vector<8xf32>
    %7 = vector.shape_cast %6 : vector<8xf32> to vector<8x1xf32>
    %8 = tpu.reciprocal %7 {approx = true} : vector<8x1xf32> -> vector<8x1xf32>
    %9 = vector.broadcast %8 : vector<8x1xf32> to vector<8x8xf32>
    %10 = arith.mulf %5, %9 : vector<8x8xf32>
    %11 = vector.shape_cast %10 : vector<8x8xf32> to vector<8x8x1xf32>
    %c0_2 = arith.constant 0 : index
    %c0_3 = arith.constant 0 : index
    %12 = vector.load %arg3[%c0_2, %c0_3] : memref<1x32xf32, #tpu.memory_space<vmem>>, vector<1x32xf32>
    %13 = vector.shape_cast %12 : vector<1x32xf32> to vector<1x1x32xf32>
    %14 = vector.broadcast %11 : vector<8x8x1xf32> to vector<8x8x32xf32>
    %15 = vector.broadcast %13 : vector<1x1x32xf32> to vector<8x8x32xf32>
    %16 = arith.mulf %14, %15 : vector<8x8x32xf32>
    %c0_4 = arith.constant 0 : index
    %c0_5 = arith.constant 0 : index
    %17 = vector.load %arg4[%c0_4, %c0_5] : memref<1x32xf32, #tpu.memory_space<vmem>>, vector<1x32xf32>
    %18 = vector.shape_cast %17 : vector<1x32xf32> to vector<1x1x32xf32>
    %19 = vector.broadcast %18 : vector<1x1x32xf32> to vector<8x8x32xf32>
    %20 = arith.addf %16, %19 : vector<8x8x32xf32>
    %21 = math.absf %20 : vector<8x8x32xf32>
    %c0_6 = arith.constant 0 : index
    %c0_7 = arith.constant 0 : index
    %c0_8 = arith.constant 0 : index
    %22 = vector.load %arg1[%c0_6, %c0_7, %c0_8] : memref<8x8x32xf32, #tpu.memory_space<vmem>>, vector<8x8x32xf32>
    %23 = arith.truncf %22 : vector<8x8x32xf32> to vector<8x8x32xbf16>
    %24 = arith.truncf %21 : vector<8x8x32xf32> to vector<8x8x32xbf16>
    "tpu.trace_start"() <{level = 10 : i32, message = "bnh,bng->bhg"}> : () -> ()
    %cst_9 = arith.constant dense<0.000000e+00> : vector<8x32x32xf32>
    %25 = tpu.matmul %23, %24, %cst_9 {dimension_numbers = #tpu.dot_dimension_numbers<[1], [1], [2], [2], [0, 0, 0, 2, 1, 2], [0], [0]>} : vector<8x8x32xbf16>, vector<8x8x32xbf16>, vector<8x32x32xf32> -> vector<8x32x32xf32>
    %cst_10 = arith.constant 0.000000e+00 : f32
    "tpu.trace_stop"() : () -> ()
    %26 = vector.broadcast %cst_10 : f32 to vector<8x32x32xf32>
    %27 = arith.cmpf ogt, %25, %26 : vector<8x32x32xf32>
    %cst_11 = arith.constant 2.000000e-01 : f32
    %28 = vector.broadcast %cst_11 : f32 to vector<8x32x32xf32>
    %29 = arith.mulf %28, %25 : vector<8x32x32xf32>
    %30 = arith.select %27, %25, %29 : vector<8x32x32xi1>, vector<8x32x32xf32>
    %c0_12 = arith.constant 0 : index
    %c0_13 = arith.constant 0 : index
    %31 = vector.load %arg5[%c0_12, %c0_13] : memref<1x32xf32, #tpu.memory_space<vmem>>, vector<1x32xf32>
    %32 = vector.shape_cast %31 : vector<1x32xf32> to vector<1x1x32xf32>
    %33 = vector.broadcast %32 : vector<1x1x32xf32> to vector<8x32x32xf32>
    %34 = arith.mulf %30, %33 : vector<8x32x32xf32>
    %cst_14 = arith.constant dense<0.000000e+00> : vector<8x32xf32>
    %35 = vector.multi_reduction <add>, %34, %cst_14 [2] : vector<8x32x32xf32> to vector<8x32xf32>
    %36 = arith.truncf %35 : vector<8x32xf32> to vector<8x32xbf16>
    %c0_15 = arith.constant 0 : index
    %c0_16 = arith.constant 0 : index
    %37 = vector.load %arg6[%c0_15, %c0_16] : memref<32x32xbf16, #tpu.memory_space<vmem>>, vector<32x32xbf16>
    "tpu.trace_start"() <{level = 10 : i32, message = "bh,hk->bk"}> : () -> ()
    %cst_17 = arith.constant dense<0.000000e+00> : vector<8x32xf32>
    %38 = tpu.matmul %36, %37, %cst_17 {dimension_numbers = #tpu.dot_dimension_numbers<[1], [0], [0], [1], [0, 0, 1, 1], [], []>} : vector<8x32xbf16>, vector<32x32xbf16>, vector<8x32xf32> -> vector<8x32xf32>
    "tpu.trace_stop"() : () -> ()
    %c0_18 = arith.constant 0 : index
    %c0_19 = arith.constant 0 : index
    %39 = vector.load %arg7[%c0_18, %c0_19] : memref<1x32xf32, #tpu.memory_space<vmem>>, vector<1x32xf32>
    %40 = vector.broadcast %39 : vector<1x32xf32> to vector<8x32xf32>
    %41 = arith.addf %38, %40 : vector<8x32xf32>
    %c0_20 = arith.constant 0 : index
    %c0_21 = arith.constant 0 : index
    %42 = vector.load %arg8[%c0_20, %c0_21] : memref<8x32xf32, #tpu.memory_space<vmem>>, vector<8x32xf32>
    tpu.vector_store %arg8[%c0_20, %c0_21], %41 {strides = array<i32>} : memref<8x32xf32, #tpu.memory_space<vmem>>, vector<8x32xf32>,
    return
  }
  func.func @transform_0(%arg0: i32) -> (i32, i32, i32) {
    %c0_i32 = arith.constant 0 : i32
    %c0_i32_0 = arith.constant 0 : i32
    %c0_i32_1 = arith.constant 0 : i32
    return %arg0, %c0_i32, %c0_i32_0 : i32, i32, i32
  }
  func.func @transform_1(%arg0: i32) -> (i32, i32) {
    %c0_i32 = arith.constant 0 : i32
    %c0_i32_0 = arith.constant 0 : i32
    return %arg0, %c0_i32 : i32, i32
  }
  func.func @transform_2(%arg0: i32) -> (i32, i32) {
    %c0_i32 = arith.constant 0 : i32
    %c0_i32_0 = arith.constant 0 : i32
    %c0_i32_1 = arith.constant 0 : i32
    return %c0_i32, %c0_i32_0 : i32, i32
  }
  func.func @transform_3(%arg0: i32) -> (i32, i32) {
    %c0_i32 = arith.constant 0 : i32
    %c0_i32_0 = arith.constant 0 : i32
    %c0_i32_1 = arith.constant 0 : i32
    return %c0_i32, %c0_i32_0 : i32, i32
  }
  func.func @transform_4(%arg0: i32) -> (i32, i32) {
    %c0_i32 = arith.constant 0 : i32
    %c0_i32_0 = arith.constant 0 : i32
    %c0_i32_1 = arith.constant 0 : i32
    return %c0_i32, %c0_i32_0 : i32, i32
  }
  func.func @transform_5(%arg0: i32) -> (i32, i32) {
    %c0_i32 = arith.constant 0 : i32
    %c0_i32_0 = arith.constant 0 : i32
    %c0_i32_1 = arith.constant 0 : i32
    return %c0_i32, %c0_i32_0 : i32, i32
  }
  func.func @transform_6(%arg0: i32) -> (i32, i32) {
    %c0_i32 = arith.constant 0 : i32
    %c0_i32_0 = arith.constant 0 : i32
    %c0_i32_1 = arith.constant 0 : i32
    return %c0_i32, %c0_i32_0 : i32, i32
  }
  func.func @transform_7(%arg0: i32) -> (i32, i32) {
    %c0_i32 = arith.constant 0 : i32
    %c0_i32_0 = arith.constant 0 : i32
    return %arg0, %c0_i32 : i32, i32
  }
}

</mosaic_0001>

<llo_original>
// kernel: tpu_custom_call.1
$region0: #{tpu_custom_call.1}
  #allocation0 [shape = 'u32[]', space=smem, size = 0x4, offset = 0x4, fixed_abs, tag = 'smem constant byte address 0x4 - core index']
  #allocation1 [shape = 'u32[144,128]{1,0:T(1,128)}', space=vmem, size = 0x12000, scoped, tag = 'internal scratch']
  %s0 = inlined_call_operand.hbm [shape: f32[2,8,32], index: 0, kind: input, shape index: {}]
  %s1 = inlined_call_operand.vmem [shape: f32[2,8], index: 1, kind: input, shape index: {}]
  %s2 = inlined_call_operand.hbm [shape: f32[1,32], index: 2, kind: input, shape index: {}]
  %s3 = inlined_call_operand.hbm [shape: f32[1,32], index: 3, kind: input, shape index: {}]
  %s4 = inlined_call_operand.hbm [shape: f32[1,32], index: 4, kind: input, shape index: {}]
  %s5 = inlined_call_operand.vmem [shape: bf16[32,32], index: 5, kind: input, shape index: {}]
  %s6 = inlined_call_operand.vmem [shape: f32[1,32], index: 6, kind: input, shape index: {}]
  %s7 = inlined_call_operand.hbm [shape: f32[2,32], index: 7, kind: output, shape index: {}]
  %s8 = sld [smem:[#allocation0]]
  $region54: #{tpu_custom_call.1} parent=0
    _
  %s10 = ssub.s32 1, %s8
  %s11 = scalar_select 0, %s10, %s8
  $region1: #{tpu_custom_call.1} parent=0
    #allocation2 [shape = 'u8[32768]{0}', space=vmem, size = 0x8000, scoped, tag = 'input window, operand 0, single buffered']
    #allocation3 [shape = 's32[1]{0}', space=sflag, size = 0x4, scoped, tag = 'scoped memory for tpu_custom_call.1']
    #allocation4 [shape = 's32[1]{0}', space=sflag, size = 0x4, scoped, tag = 'scoped memory for tpu_custom_call.1']
    #allocation5 [shape = 'u8[512]{0}', space=vmem, size = 0x400, scoped, tag = 'input window, operand 2, single buffered']
    #allocation6 [shape = 's32[1]{0}', space=sflag, size = 0x4, scoped, tag = 'scoped memory for tpu_custom_call.1']
    #allocation7 [shape = 'u8[512]{0}', space=vmem, size = 0x400, scoped, tag = 'input window, operand 3, single buffered']
    #allocation8 [shape = 'u8[512]{0}', space=vmem, size = 0x400, scoped, tag = 'input window, operand 4, single buffered']
    #allocation9 [shape = 's32[1]{0}', space=sflag, size = 0x4, scoped, tag = 'scoped memory for tpu_custom_call.1']
    #allocation10 [shape = 'u8[4096]{0}', space=vmem, size = 0x1000, scoped, tag = 'output window, operand 0, single buffered']
    %12 = vsyncpa [#allocation3], 0
    %13 = vsyncpa [#allocation6], 0
    %14 = vsyncpa [#allocation9], 0
    %15 = vsyncpa [#allocation4], 0
    // Predicated region
    $region2: #{tpu_custom_call.1} parent=1 // pred_check
      _
    $region3: #{tpu_custom_call.1} parent=1 // pred_check_branch
      %17 = sbr.rel (0) target = $region5
    $region4: #{tpu_custom_call.1} parent=1 // pred_region
      %s19 = ssub.s32 1024, 256
      %20 = vsyncadd [#allocation3], %s19
      %s21 = sshll.u32 [#allocation2], 4
      %s22 = int_to_ptr.vmem [resolvable:$true] %s21
      %27 = dma.hbm_to_vmem [thread:$0]  %s0, 256, %s22, [#allocation3], 128, 128, 8
    $region5: #{tpu_custom_call.1} parent=1 // pred_fallthru
      _
    // Predicated region
    $region6: #{tpu_custom_call.1} parent=1 // pred_check
      _
    $region7: #{tpu_custom_call.1} parent=1 // pred_check_branch
      %29 = sbr.rel (0) target = $region9
    $region8: #{tpu_custom_call.1} parent=1 // pred_region
      _
    $region9: #{tpu_custom_call.1} parent=1 // pred_fallthru
      _
    // Predicated region
    $region10: #{tpu_custom_call.1} parent=1 // pred_check
      _
    $region11: #{tpu_custom_call.1} parent=1 // pred_check_branch
      %31 = sbr.rel (0) target = $region13
    $region12: #{tpu_custom_call.1} parent=1 // pred_region
      %s33 = ssub.s32 16, 16
      %34 = vsyncadd [#allocation6], %s33
      %s36 = sshll.u32 [#allocation5], 4
      %s37 = int_to_ptr.vmem [resolvable:$true] %s36
      %39 = dma.hbm_to_vmem [thread:$0]  %s2, 16, %s37, [#allocation6]
    $region13: #{tpu_custom_call.1} parent=1 // pred_fallthru
      _
    // Predicated region
    $region14: #{tpu_custom_call.1} parent=1 // pred_check
      _
    $region15: #{tpu_custom_call.1} parent=1 // pred_check_branch
      %41 = sbr.rel (0) target = $region17
    $region16: #{tpu_custom_call.1} parent=1 // pred_region
      %s43 = ssub.s32 16, 16
      %44 = vsyncadd [#allocation6], %s43
      %s46 = sshll.u32 [#allocation7], 4
      %s47 = int_to_ptr.vmem [resolvable:$true] %s46
      %49 = dma.hbm_to_vmem [thread:$0]  %s3, 16, %s47, [#allocation6]
    $region17: #{tpu_custom_call.1} parent=1 // pred_fallthru
      _
    // Predicated region
    $region18: #{tpu_custom_call.1} parent=1 // pred_check
      _
    $region19: #{tpu_custom_call.1} parent=1 // pred_check_branch
      %51 = sbr.rel (0) target = $region21
    $region20: #{tpu_custom_call.1} parent=1 // pred_region
      %s53 = ssub.s32 16, 16
      %54 = vsyncadd [#allocation9], %s53
      %s56 = sshll.u32 [#allocation8], 4
      %s57 = int_to_ptr.vmem [resolvable:$true] %s56
      %59 = dma.hbm_to_vmem [thread:$0]  %s4, 16, %s57, [#allocation9]
    $region21: #{tpu_custom_call.1} parent=1 // pred_fallthru
      _
    // Predicated region
    $region22: #{tpu_custom_call.1} parent=1 // pred_check
      _
    $region23: #{tpu_custom_call.1} parent=1 // pred_check_branch
      %61 = sbr.rel (0) target = $region25
    $region24: #{tpu_custom_call.1} parent=1 // pred_region
      _
    $region25: #{tpu_custom_call.1} parent=1 // pred_fallthru
      _
    // Predicated region
    $region26: #{tpu_custom_call.1} parent=1 // pred_check
      _
    $region27: #{tpu_custom_call.1} parent=1 // pred_check_branch
      %63 = sbr.rel (0) target = $region29
    $region28: #{tpu_custom_call.1} parent=1 // pred_region
      _
    $region29: #{tpu_custom_call.1} parent=1 // pred_fallthru
      _
    // Predicated region
    $region30: #{tpu_custom_call.1} parent=1 // pred_check
      _
    $region31: #{tpu_custom_call.1} parent=1 // pred_check_branch
      %65 = sbr.rel (0) target = $region33
    $region32: #{tpu_custom_call.1} parent=1 // pred_region
      %66 = dma.done [#allocation3], 1024
    $region33: #{tpu_custom_call.1} parent=1 // pred_fallthru
      _
    // Predicated region
    $region34: #{tpu_custom_call.1} parent=1 // pred_check
      _
    $region35: #{tpu_custom_call.1} parent=1 // pred_check_branch
      %68 = sbr.rel (0) target = $region37
    $region36: #{tpu_custom_call.1} parent=1 // pred_region
      %69 = dma.done [#allocation6], 16
    $region37: #{tpu_custom_call.1} parent=1 // pred_fallthru
      _
    // Predicated region
    $region38: #{tpu_custom_call.1} parent=1 // pred_check
      _
    $region39: #{tpu_custom_call.1} parent=1 // pred_check_branch
      %71 = sbr.rel (0) target = $region41
    $region40: #{tpu_custom_call.1} parent=1 // pred_region
      %72 = dma.done [#allocation6], 16
    $region41: #{tpu_custom_call.1} parent=1 // pred_fallthru
      _
    // Predicated region
    $region42: #{tpu_custom_call.1} parent=1 // pred_check
      _
    $region43: #{tpu_custom_call.1} parent=1 // pred_check_branch
      %74 = sbr.rel (0) target = $region45
    $region44: #{tpu_custom_call.1} parent=1 // pred_region
      %75 = dma.done [#allocation9], 16
    $region45: #{tpu_custom_call.1} parent=1 // pred_fallthru
      _
    %v77 = vld [vmem:[%s1] sm:$0xff]
    %vm78 = vcmask 64512
    %v79 = vsel %vm78, %v77, -inf
    %80 = vmax.xlane.f32.xlu0 %v79
    %v81 = vpop.xlane.xlu0 %80
    %v82 = vsub.f32 %v77, %v81
    %v83 = vmul.f32 %v82, 1.442695
    %v84 = vpow.pop %v83
    %v85 = vsel %vm78, %v84, 0.0
    %86 = vadd.xlane.f32.xlu0 %v85
    %v87 = vpop.xlane.xlu0 %86
    %v88 = vrcp.pop %v87
    %v89 = vmul.f32 %v84, %v88
    %v90 = vlaneseq
    %v91 = vshrl.u32 %v90, 7
    %v92 = vsub.s32 0, %v91
    %v93 = vrot.slane %v89, %v92
    %95 = vbcast.lane.b32.xlu0 %v93, 256
    %v96 = vpop.permute.xlu0 %95
    %v97 = vlaneseq
    %v98 = vshrl.u32 %v97, 7
    %v99 = vsub.s32 1, %v98
    %v100 = vrot.slane %v89, %v99
    %102 = vbcast.lane.b32.xlu0 %v100, 256
    %v103 = vpop.permute.xlu0 %102
    %v104 = vlaneseq
    %v105 = vshrl.u32 %v104, 7
    %v106 = vsub.s32 2, %v105
    %v107 = vrot.slane %v89, %v106
    %109 = vbcast.lane.b32.xlu0 %v107, 256
    %v110 = vpop.permute.xlu0 %109
    %v111 = vlaneseq
    %v112 = vshrl.u32 %v111, 7
    %v113 = vsub.s32 3, %v112
    %v114 = vrot.slane %v89, %v113
    %116 = vbcast.lane.b32.xlu0 %v114, 256
    %v117 = vpop.permute.xlu0 %116
    %v118 = vlaneseq
    %v119 = vshrl.u32 %v118, 7
    %v120 = vsub.s32 4, %v119
    %v121 = vrot.slane %v89, %v120
    %123 = vbcast.lane.b32.xlu0 %v121, 256
    %v124 = vpop.permute.xlu0 %123
    %v125 = vlaneseq
    %v126 = vshrl.u32 %v125, 7
    %v127 = vsub.s32 5, %v126
    %v128 = vrot.slane %v89, %v127
    %130 = vbcast.lane.b32.xlu0 %v128, 256
    %v131 = vpop.permute.xlu0 %130
    %v132 = vlaneseq
    %v133 = vshrl.u32 %v132, 7
    %v134 = vsub.s32 6, %v133
    %v135 = vrot.slane %v89, %v134
    %137 = vbcast.lane.b32.xlu0 %v135, 256
    %v138 = vpop.permute.xlu0 %137
    %v139 = vlaneseq
    %v140 = vshrl.u32 %v139, 7
    %v141 = vsub.s32 7, %v140
    %v142 = vrot.slane %v89, %v141
    %144 = vbcast.lane.b32.xlu0 %v142, 256
    %v145 = vpop.permute.xlu0 %144
    %v146 = vld [vmem:[#allocation5] sm:$0x1]
    %v148 = vlaneseq
    %v149 = vshrl.u32 %v148, 7
    %v150 = vsub.s32 0, %v149
    %v151 = vrot.slane %v146, %v150
    %v153 = vmul.f32 %v96, %v151
    %v154 = vmul.f32 %v103, %v151
    %v155 = vmul.f32 %v110, %v151
    %v156 = vmul.f32 %v117, %v151
    %v157 = vmul.f32 %v124, %v151
    %v158 = vmul.f32 %v131, %v151
    %v159 = vmul.f32 %v138, %v151
    %v160 = vmul.f32 %v145, %v151
    %v161 = vld [vmem:[#allocation7] sm:$0x1]
    %v163 = vlaneseq
    %v164 = vshrl.u32 %v163, 7
    %v165 = vsub.s32 0, %v164
    %v166 = vrot.slane %v161, %v165
    %v168 = vadd.f32 %v153, %v166
    %v169 = vadd.f32 %v154, %v166
    %v170 = vadd.f32 %v155, %v166
    %v171 = vadd.f32 %v156, %v166
    %v172 = vadd.f32 %v157, %v166
    %v173 = vadd.f32 %v158, %v166
    %v174 = vadd.f32 %v159, %v166
    %v175 = vadd.f32 %v160, %v166
    %v176 = vand.u32 2147483647, %v168
    %v177 = vand.u32 2147483647, %v169
    %v178 = vand.u32 2147483647, %v170
    %v179 = vand.u32 2147483647, %v171
    %v180 = vand.u32 2147483647, %v172
    %v181 = vand.u32 2147483647, %v173
    %v182 = vand.u32 2147483647, %v174
    %v183 = vand.u32 2147483647, %v175
    %v184 = vld [vmem:[#allocation2] sm:$0xff]
    %v185 = vld [vmem:[#allocation2 + $0x8] sm:$0xff]
    %v186 = vld [vmem:[#allocation2 + $0x10] sm:$0xff]
    %v187 = vld [vmem:[#allocation2 + $0x18] sm:$0xff]
    %v188 = vld [vmem:[#allocation2 + $0x20] sm:$0xff]
    %v189 = vld [vmem:[#allocation2 + $0x28] sm:$0xff]
    %v190 = vld [vmem:[#allocation2 + $0x30] sm:$0xff]
    %v191 = vld [vmem:[#allocation2 + $0x38] sm:$0xff]
    %v192 = vpack.c.bf16 %v184, %v184
    %v193 = vpack.c.bf16 %v185, %v185
    %v194 = vpack.c.bf16 %v186, %v186
    %v195 = vpack.c.bf16 %v187, %v187
    %v196 = vpack.c.bf16 %v188, %v188
    %v197 = vpack.c.bf16 %v189, %v189
    %v198 = vpack.c.bf16 %v190, %v190
    %v199 = vpack.c.bf16 %v191, %v191
    %v200 = vpack.c.bf16 %v176, %v176
    %v201 = vpack.c.bf16 %v177, %v177
    %v202 = vpack.c.bf16 %v178, %v178
    %v203 = vpack.c.bf16 %v179, %v179
    %v204 = vpack.c.bf16 %v180, %v180
    %v205 = vpack.c.bf16 %v181, %v181
    %v206 = vpack.c.bf16 %v182, %v182
    %v207 = vpack.c.bf16 %v183, %v183
    %208 = vxpose.xlu0.c.b16.start [1/8] %v192, 128
    %209 = vxpose.xlu0.c.b16.cont [2/8] 0, 128
    %210 = vxpose.xlu0.c.b16.cont [3/8] 0, 128
    %211 = vxpose.xlu0.c.b16.cont [4/8] 0, 128
    %212 = vxpose.xlu0.c.b16.cont [5/8] 0, 128
    %213 = vxpose.xlu0.c.b16.cont [6/8] 0, 128
    %214 = vxpose.xlu0.c.b16.cont [7/8] 0, 128
    %215 = vxpose.xlu0.c.b16.end [8/8] 0, 128
    %v216 = vpop.trf.xlu0
    %v217 = vpop.trf.xlu0
    %v218 = vpop.trf.xlu0
    %v219 = vpop.trf.xlu0
    %v220 = vpop.trf.xlu0
    %v221 = vpop.trf.xlu0
    %v222 = vpop.trf.xlu0
    %v223 = vpop.trf.xlu0
    %v225 = vsel %vm78, %v216, 0
    %v228 = vsel %vm78, %v217, 0
    %vm230 = vcmask 1043456
    %v232 = vsel %vm230, %v200, 0
    %234 = vmatprep.subr.bf16.mxu0 0
    %235 = vmatpush1.bf16.msra.mxu0 %v232
    %236 = vmatprep.subr.bf16.mxu0 0
    %237 = vmatpush1.bf16.msra.mxu0 0
    %238 = vmatprep.subr.bf16.mxu0 0
    %239 = vmatpush1.bf16.msra.mxu0 0
    %240 = vmatprep.subr.bf16.mxu0 0
    %241 = vmatpush1.bf16.msra.mxu0 0
    %242 = vmatprep.subr.bf16.mxu0 0
    %243 = vmatpush1.bf16.msra.mxu0 0
    %244 = vmatprep.subr.bf16.mxu0 0
    %245 = vmatpush1.bf16.msra.mxu0 0
    %246 = vmatprep.subr.bf16.mxu0 0
    %247 = vmatpush1.bf16.msra.mxu0 0
    %248 = vmatprep.subr.bf16.mxu0 0
    %249 = vmatpush1.bf16.msra.mxu0 0
    %250 = vmatprep.subr.bf16.mxu0 0
    %251 = vmatpush1.bf16.msra.mxu0 0
    %252 = vmatprep.subr.bf16.mxu0 0
    %253 = vmatpush1.bf16.msra.mxu0 0
    %254 = vmatprep.subr.bf16.mxu0 0
    %255 = vmatpush1.bf16.msra.mxu0 0
    %256 = vmatprep.subr.bf16.mxu0 0
    %257 = vmatpush1.bf16.msra.mxu0 0
    %258 = vmatprep.subr.bf16.mxu0 0
    %259 = vmatpush1.bf16.msra.mxu0 0
    %260 = vmatprep.subr.bf16.mxu0 0
    %261 = vmatpush1.bf16.msra.mxu0 0
    %262 = vmatprep.subr.bf16.mxu0 0
    %263 = vmatpush1.bf16.msra.mxu0 0
    %264 = vmatprep.subr.bf16.mxu0 0
    %265 = vmatpush1.bf16.msra.mxu0 0
    %266 = vmatprep.mubr.bf16.mxu0 0
    %267 = vmatmul.mubr.bf16.gmra.mrb[0].mxu0 %v225
    %v268 = vpop.f32.mrb[0].mxu0
    %v269 = vadd.f32 0.0, %v268
    %v270 = vpop.f32.mrb[0].mxu0
    %v271 = vpop.f32.mrb[0].mxu0
    %v272 = vadd.f32 0.0, %v271
    %v273 = vpop.f32.mrb[0].mxu0
    %274 = vmatprep.mubr.bf16.mxu0 0
    %275 = vmatmul.mubr.bf16.gmra.mrb[0].mxu0 %v228
    %v276 = vpop.f32.mrb[0].mxu0
    %v277 = vadd.f32 0.0, %v276
    %v278 = vpop.f32.mrb[0].mxu0
    %v279 = vpop.f32.mrb[0].mxu0
    %v280 = vadd.f32 0.0, %v279
    %v281 = vpop.f32.mrb[0].mxu0
    %282 = vdwg.mxu0
    %283 = vxpose.xlu0.c.b16.start [1/8] %v193, 128
    %284 = vxpose.xlu0.c.b16.cont [2/8] 0, 128
    %285 = vxpose.xlu0.c.b16.cont [3/8] 0, 128
    %286 = vxpose.xlu0.c.b16.cont [4/8] 0, 128
    %287 = vxpose.xlu0.c.b16.cont [5/8] 0, 128
    %288 = vxpose.xlu0.c.b16.cont [6/8] 0, 128
    %289 = vxpose.xlu0.c.b16.cont [7/8] 0, 128
    %290 = vxpose.xlu0.c.b16.end [8/8] 0, 128
    %v291 = vpop.trf.xlu0
    %v292 = vpop.trf.xlu0
    %v293 = vpop.trf.xlu0
    %v294 = vpop.trf.xlu0
    %v295 = vpop.trf.xlu0
    %v296 = vpop.trf.xlu0
    %v297 = vpop.trf.xlu0
    %v298 = vpop.trf.xlu0
    %v300 = vsel %vm78, %v291, 0
    %v303 = vsel %vm78, %v292, 0
    %v306 = vsel %vm230, %v201, 0
    %308 = vmatprep.subr.bf16.mxu0 0
    %309 = vmatpush1.bf16.msra.mxu0 %v306
    %310 = vmatprep.subr.bf16.mxu0 0
    %311 = vmatpush1.bf16.msra.mxu0 0
    %312 = vmatprep.subr.bf16.mxu0 0
    %313 = vmatpush1.bf16.msra.mxu0 0
    %314 = vmatprep.subr.bf16.mxu0 0
    %315 = vmatpush1.bf16.msra.mxu0 0
    %316 = vmatprep.subr.bf16.mxu0 0
    %317 = vmatpush1.bf16.msra.mxu0 0
    %318 = vmatprep.subr.bf16.mxu0 0
    %319 = vmatpush1.bf16.msra.mxu0 0
    %320 = vmatprep.subr.bf16.mxu0 0
    %321 = vmatpush1.bf16.msra.mxu0 0
    %322 = vmatprep.subr.bf16.mxu0 0
    %323 = vmatpush1.bf16.msra.mxu0 0
    %324 = vmatprep.subr.bf16.mxu0 0
    %325 = vmatpush1.bf16.msra.mxu0 0
    %326 = vmatprep.subr.bf16.mxu0 0
    %327 = vmatpush1.bf16.msra.mxu0 0
    %328 = vmatprep.subr.bf16.mxu0 0
    %329 = vmatpush1.bf16.msra.mxu0 0
    %330 = vmatprep.subr.bf16.mxu0 0
    %331 = vmatpush1.bf16.msra.mxu0 0
    %332 = vmatprep.subr.bf16.mxu0 0
    %333 = vmatpush1.bf16.msra.mxu0 0
    %334 = vmatprep.subr.bf16.mxu0 0
    %335 = vmatpush1.bf16.msra.mxu0 0
    %336 = vmatprep.subr.bf16.mxu0 0
    %337 = vmatpush1.bf16.msra.mxu0 0
    %338 = vmatprep.subr.bf16.mxu0 0
    %339 = vmatpush1.bf16.msra.mxu0 0
    %340 = vmatprep.mubr.bf16.mxu0 0
    %341 = vmatmul.mubr.bf16.gmra.mrb[0].mxu0 %v300
    %v342 = vpop.f32.mrb[0].mxu0
    %v343 = vadd.f32 0.0, %v342
    %v344 = vpop.f32.mrb[0].mxu0
    %v345 = vpop.f32.mrb[0].mxu0
    %v346 = vadd.f32 0.0, %v345
    %v347 = vpop.f32.mrb[0].mxu0
    %348 = vmatprep.mubr.bf16.mxu0 0
    %349 = vmatmul.mubr.bf16.gmra.mrb[0].mxu0 %v303
    %v350 = vpop.f32.mrb[0].mxu0
    %v351 = vadd.f32 0.0, %v350
    %v352 = vpop.f32.mrb[0].mxu0
    %v353 = vpop.f32.mrb[0].mxu0
    %v354 = vadd.f32 0.0, %v353
    %v355 = vpop.f32.mrb[0].mxu0
    %356 = vdwg.mxu0
    %357 = vxpose.xlu0.c.b16.start [1/8] %v194, 128
    %358 = vxpose.xlu0.c.b16.cont [2/8] 0, 128
    %359 = vxpose.xlu0.c.b16.cont [3/8] 0, 128
    %360 = vxpose.xlu0.c.b16.cont [4/8] 0, 128
    %361 = vxpose.xlu0.c.b16.cont [5/8] 0, 128
    %362 = vxpose.xlu0.c.b16.cont [6/8] 0, 128
    %363 = vxpose.xlu0.c.b16.cont [7/8] 0, 128
    %364 = vxpose.xlu0.c.b16.end [8/8] 0, 128
    %v365 = vpop.trf.xlu0
    %v366 = vpop.trf.xlu0
    %v367 = vpop.trf.xlu0
    %v368 = vpop.trf.xlu0
    %v369 = vpop.trf.xlu0
    %v370 = vpop.trf.xlu0
    %v371 = vpop.trf.xlu0
    %v372 = vpop.trf.xlu0
    %v374 = vsel %vm78, %v365, 0
    %v377 = vsel %vm78, %v366, 0
    %v380 = vsel %vm230, %v202, 0
    %382 = vmatprep.subr.bf16.mxu0 0
    %383 = vmatpush1.bf16.msra.mxu0 %v380
    %384 = vmatprep.subr.bf16.mxu0 0
    %385 = vmatpush1.bf16.msra.mxu0 0
    %386 = vmatprep.subr.bf16.mxu0 0
    %387 = vmatpush1.bf16.msra.mxu0 0
    %388 = vmatprep.subr.bf16.mxu0 0
    %389 = vmatpush1.bf16.msra.mxu0 0
    %390 = vmatprep.subr.bf16.mxu0 0
    %391 = vmatpush1.bf16.msra.mxu0 0
    %392 = vmatprep.subr.bf16.mxu0 0
    %393 = vmatpush1.bf16.msra.mxu0 0
    %394 = vmatprep.subr.bf16.mxu0 0
    %395 = vmatpush1.bf16.msra.mxu0 0
    %396 = vmatprep.subr.bf16.mxu0 0
    %397 = vmatpush1.bf16.msra.mxu0 0
    %398 = vmatprep.subr.bf16.mxu0 0
    %399 = vmatpush1.bf16.msra.mxu0 0
    %400 = vmatprep.subr.bf16.mxu0 0
    %401 = vmatpush1.bf16.msra.mxu0 0
    %402 = vmatprep.subr.bf16.mxu0 0
    %403 = vmatpush1.bf16.msra.mxu0 0
    %404 = vmatprep.subr.bf16.mxu0 0
    %405 = vmatpush1.bf16.msra.mxu0 0
    %406 = vmatprep.subr.bf16.mxu0 0
    %407 = vmatpush1.bf16.msra.mxu0 0
    %408 = vmatprep.subr.bf16.mxu0 0
    %409 = vmatpush1.bf16.msra.mxu0 0
    %410 = vmatprep.subr.bf16.mxu0 0
    %411 = vmatpush1.bf16.msra.mxu0 0
    %412 = vmatprep.subr.bf16.mxu0 0
    %413 = vmatpush1.bf16.msra.mxu0 0
    %414 = vmatprep.mubr.bf16.mxu0 0
    %415 = vmatmul.mubr.bf16.gmra.mrb[0].mxu0 %v374
    %v416 = vpop.f32.mrb[0].mxu0
    %v417 = vadd.f32 0.0, %v416
    %v418 = vpop.f32.mrb[0].mxu0
    %v419 = vpop.f32.mrb[0].mxu0
    %v420 = vadd.f32 0.0, %v419
    %v421 = vpop.f32.mrb[0].mxu0
    %422 = vmatprep.mubr.bf16.mxu0 0
    %423 = vmatmul.mubr.bf16.gmra.mrb[0].mxu0 %v377
    %v424 = vpop.f32.mrb[0].mxu0
    %v425 = vadd.f32 0.0, %v424
    %v426 = vpop.f32.mrb[0].mxu0
    %v427 = vpop.f32.mrb[0].mxu0
    %v428 = vadd.f32 0.0, %v427
    %v429 = vpop.f32.mrb[0].mxu0
    %430 = vdwg.mxu0
    %431 = vxpose.xlu0.c.b16.start [1/8] %v195, 128
    %432 = vxpose.xlu0.c.b16.cont [2/8] 0, 128
    %433 = vxpose.xlu0.c.b16.cont [3/8] 0, 128
    %434 = vxpose.xlu0.c.b16.cont [4/8] 0, 128
    %435 = vxpose.xlu0.c.b16.cont [5/8] 0, 128
    %436 = vxpose.xlu0.c.b16.cont [6/8] 0, 128
    %437 = vxpose.xlu0.c.b16.cont [7/8] 0, 128
    %438 = vxpose.xlu0.c.b16.end [8/8] 0, 128
    %v439 = vpop.trf.xlu0
    %v440 = vpop.trf.xlu0
    %v441 = vpop.trf.xlu0
    %v442 = vpop.trf.xlu0
    %v443 = vpop.trf.xlu0
    %v444 = vpop.trf.xlu0
    %v445 = vpop.trf.xlu0
    %v446 = vpop.trf.xlu0
    %v448 = vsel %vm78, %v439, 0
    %v451 = vsel %vm78, %v440, 0
    %v454 = vsel %vm230, %v203, 0
    %456 = vmatprep.subr.bf16.mxu0 0
    %457 = vmatpush1.bf16.msra.mxu0 %v454
    %458 = vmatprep.subr.bf16.mxu0 0
    %459 = vmatpush1.bf16.msra.mxu0 0
    %460 = vmatprep.subr.bf16.mxu0 0
    %461 = vmatpush1.bf16.msra.mxu0 0
    %462 = vmatprep.subr.bf16.mxu0 0
    %463 = vmatpush1.bf16.msra.mxu0 0
    %464 = vmatprep.subr.bf16.mxu0 0
    %465 = vmatpush1.bf16.msra.mxu0 0
    %466 = vmatprep.subr.bf16.mxu0 0
    %467 = vmatpush1.bf16.msra.mxu0 0
    %468 = vmatprep.subr.bf16.mxu0 0
    %469 = vmatpush1.bf16.msra.mxu0 0
    %470 = vmatprep.subr.bf16.mxu0 0
    %471 = vmatpush1.bf16.msra.mxu0 0
    %472 = vmatprep.subr.bf16.mxu0 0
    %473 = vmatpush1.bf16.msra.mxu0 0
    %474 = vmatprep.subr.bf16.mxu0 0
    %475 = vmatpush1.bf16.msra.mxu0 0
    %476 = vmatprep.subr.bf16.mxu0 0
    %477 = vmatpush1.bf16.msra.mxu0 0
    %478 = vmatprep.subr.bf16.mxu0 0
    %479 = vmatpush1.bf16.msra.mxu0 0
    %480 = vmatprep.subr.bf16.mxu0 0
    %481 = vmatpush1.bf16.msra.mxu0 0
    %482 = vmatprep.subr.bf16.mxu0 0
    %483 = vmatpush1.bf16.msra.mxu0 0
    %484 = vmatprep.subr.bf16.mxu0 0
    %485 = vmatpush1.bf16.msra.mxu0 0
    %486 = vmatprep.subr.bf16.mxu0 0
    %487 = vmatpush1.bf16.msra.mxu0 0
    %488 = vmatprep.mubr.bf16.mxu0 0
    %489 = vmatmul.mubr.bf16.gmra.mrb[0].mxu0 %v448
    %v490 = vpop.f32.mrb[0].mxu0
    %v491 = vadd.f32 0.0, %v490
    %v492 = vpop.f32.mrb[0].mxu0
    %v493 = vpop.f32.mrb[0].mxu0
    %v494 = vadd.f32 0.0, %v493
    %v495 = vpop.f32.mrb[0].mxu0
    %496 = vmatprep.mubr.bf16.mxu0 0
    %497 = vmatmul.mubr.bf16.gmra.mrb[0].mxu0 %v451
    %v498 = vpop.f32.mrb[0].mxu0
    %v499 = vadd.f32 0.0, %v498
    %v500 = vpop.f32.mrb[0].mxu0
    %v501 = vpop.f32.mrb[0].mxu0
    %v502 = vadd.f32 0.0, %v501
    %v503 = vpop.f32.mrb[0].mxu0
    %504 = vdwg.mxu0
    %505 = vxpose.xlu0.c.b16.start [1/8] %v196, 128
    %506 = vxpose.xlu0.c.b16.cont [2/8] 0, 128
    %507 = vxpose.xlu0.c.b16.cont [3/8] 0, 128
    %508 = vxpose.xlu0.c.b16.cont [4/8] 0, 128
    %509 = vxpose.xlu0.c.b16.cont [5/8] 0, 128
    %510 = vxpose.xlu0.c.b16.cont [6/8] 0, 128
    %511 = vxpose.xlu0.c.b16.cont [7/8] 0, 128
    %512 = vxpose.xlu0.c.b16.end [8/8] 0, 128
    %v513 = vpop.trf.xlu0
    %v514 = vpop.trf.xlu0
    %v515 = vpop.trf.xlu0
    %v516 = vpop.trf.xlu0
    %v517 = vpop.trf.xlu0
    %v518 = vpop.trf.xlu0
    %v519 = vpop.trf.xlu0
    %v520 = vpop.trf.xlu0
    %v522 = vsel %vm78, %v513, 0
    %v525 = vsel %vm78, %v514, 0
    %v528 = vsel %vm230, %v204, 0
    %530 = vmatprep.subr.bf16.mxu0 0
    %531 = vmatpush1.bf16.msra.mxu0 %v528
    %532 = vmatprep.subr.bf16.mxu0 0
    %533 = vmatpush1.bf16.msra.mxu0 0
    %534 = vmatprep.subr.bf16.mxu0 0
    %535 = vmatpush1.bf16.msra.mxu0 0
    %536 = vmatprep.subr.bf16.mxu0 0
    %537 = vmatpush1.bf16.msra.mxu0 0
    %538 = vmatprep.subr.bf16.mxu0 0
    %539 = vmatpush1.bf16.msra.mxu0 0
    %540 = vmatprep.subr.bf16.mxu0 0
    %541 = vmatpush1.bf16.msra.mxu0 0
    %542 = vmatprep.subr.bf16.mxu0 0
    %543 = vmatpush1.bf16.msra.mxu0 0
    %544 = vmatprep.subr.bf16.mxu0 0
    %545 = vmatpush1.bf16.msra.mxu0 0
    %546 = vmatprep.subr.bf16.mxu0 0
    %547 = vmatpush1.bf16.msra.mxu0 0
    %548 = vmatprep.subr.bf16.mxu0 0
    %549 = vmatpush1.bf16.msra.mxu0 0
    %550 = vmatprep.subr.bf16.mxu0 0
    %551 = vmatpush1.bf16.msra.mxu0 0
    %552 = vmatprep.subr.bf16.mxu0 0
    %553 = vmatpush1.bf16.msra.mxu0 0
    %554 = vmatprep.subr.bf16.mxu0 0
    %555 = vmatpush1.bf16.msra.mxu0 0
    %556 = vmatprep.subr.bf16.mxu0 0
    %557 = vmatpush1.bf16.msra.mxu0 0
    %558 = vmatprep.subr.bf16.mxu0 0
    %559 = vmatpush1.bf16.msra.mxu0 0
    %560 = vmatprep.subr.bf16.mxu0 0
    %561 = vmatpush1.bf16.msra.mxu0 0
    %562 = vmatprep.mubr.bf16.mxu0 0
    %563 = vmatmul.mubr.bf16.gmra.mrb[0].mxu0 %v522
    %v564 = vpop.f32.mrb[0].mxu0
    %v565 = vadd.f32 0.0, %v564
    %v566 = vpop.f32.mrb[0].mxu0
    %v567 = vpop.f32.mrb[0].mxu0
    %v568 = vadd.f32 0.0, %v567
    %v569 = vpop.f32.mrb[0].mxu0
    %570 = vmatprep.mubr.bf16.mxu0 0
    %571 = vmatmul.mubr.bf16.gmra.mrb[0].mxu0 %v525
    %v572 = vpop.f32.mrb[0].mxu0
    %v573 = vadd.f32 0.0, %v572
    %v574 = vpop.f32.mrb[0].mxu0
    %v575 = vpop.f32.mrb[0].mxu0
    %v576 = vadd.f32 0.0, %v575
    %v577 = vpop.f32.mrb[0].mxu0
    %578 = vdwg.mxu0
    %579 = vxpose.xlu0.c.b16.start [1/8] %v197, 128
    %580 = vxpose.xlu0.c.b16.cont [2/8] 0, 128
    %581 = vxpose.xlu0.c.b16.cont [3/8] 0, 128
    %582 = vxpose.xlu0.c.b16.cont [4/8] 0, 128
    %583 = vxpose.xlu0.c.b16.cont [5/8] 0, 128
    %584 = vxpose.xlu0.c.b16.cont [6/8] 0, 128
    %585 = vxpose.xlu0.c.b16.cont [7/8] 0, 128
    %586 = vxpose.xlu0.c.b16.end [8/8] 0, 128
    %v587 = vpop.trf.xlu0
    %v588 = vpop.trf.xlu0
    %v589 = vpop.trf.xlu0
    %v590 = vpop.trf.xlu0
    %v591 = vpop.trf.xlu0
    %v592 = vpop.trf.xlu0
    %v593 = vpop.trf.xlu0
    %v594 = vpop.trf.xlu0
    %v596 = vsel %vm78, %v587, 0
    %v599 = vsel %vm78, %v588, 0
    %v602 = vsel %vm230, %v205, 0
    %604 = vmatprep.subr.bf16.mxu0 0
    %605 = vmatpush1.bf16.msra.mxu0 %v602
    %606 = vmatprep.subr.bf16.mxu0 0
    %607 = vmatpush1.bf16.msra.mxu0 0
    %608 = vmatprep.subr.bf16.mxu0 0
    %609 = vmatpush1.bf16.msra.mxu0 0
    %610 = vmatprep.subr.bf16.mxu0 0
    %611 = vmatpush1.bf16.msra.mxu0 0
    %612 = vmatprep.subr.bf16.mxu0 0
    %613 = vmatpush1.bf16.msra.mxu0 0
    %614 = vmatprep.subr.bf16.mxu0 0
    %615 = vmatpush1.bf16.msra.mxu0 0
    %616 = vmatprep.subr.bf16.mxu0 0
    %617 = vmatpush1.bf16.msra.mxu0 0
    %618 = vmatprep.subr.bf16.mxu0 0
    %619 = vmatpush1.bf16.msra.mxu0 0
    %620 = vmatprep.subr.bf16.mxu0 0
    %621 = vmatpush1.bf16.msra.mxu0 0
    %622 = vmatprep.subr.bf16.mxu0 0
    %623 = vmatpush1.bf16.msra.mxu0 0
    %624 = vmatprep.subr.bf16.mxu0 0
    %625 = vmatpush1.bf16.msra.mxu0 0
    %626 = vmatprep.subr.bf16.mxu0 0
    %627 = vmatpush1.bf16.msra.mxu0 0
    %628 = vmatprep.subr.bf16.mxu0 0
    %629 = vmatpush1.bf16.msra.mxu0 0
    %630 = vmatprep.subr.bf16.mxu0 0
    %631 = vmatpush1.bf16.msra.mxu0 0
    %632 = vmatprep.subr.bf16.mxu0 0
    %633 = vmatpush1.bf16.msra.mxu0 0
    %634 = vmatprep.subr.bf16.mxu0 0
    %635 = vmatpush1.bf16.msra.mxu0 0
    %636 = vmatprep.mubr.bf16.mxu0 0
    %637 = vmatmul.mubr.bf16.gmra.mrb[0].mxu0 %v596
    %v638 = vpop.f32.mrb[0].mxu0
    %v639 = vadd.f32 0.0, %v638
    %v640 = vpop.f32.mrb[0].mxu0
    %v641 = vpop.f32.mrb[0].mxu0
    %v642 = vadd.f32 0.0, %v641
    %v643 = vpop.f32.mrb[0].mxu0
    %644 = vmatprep.mubr.bf16.mxu0 0
    %645 = vmatmul.mubr.bf16.gmra.mrb[0].mxu0 %v599
    %v646 = vpop.f32.mrb[0].mxu0
    %v647 = vadd.f32 0.0, %v646
    %v648 = vpop.f32.mrb[0].mxu0
    %v649 = vpop.f32.mrb[0].mxu0
    %v650 = vadd.f32 0.0, %v649
    %v651 = vpop.f32.mrb[0].mxu0
    %652 = vdwg.mxu0
    %653 = vxpose.xlu0.c.b16.start [1/8] %v198, 128
    %654 = vxpose.xlu0.c.b16.cont [2/8] 0, 128
    %655 = vxpose.xlu0.c.b16.cont [3/8] 0, 128
    %656 = vxpose.xlu0.c.b16.cont [4/8] 0, 128
    %657 = vxpose.xlu0.c.b16.cont [5/8] 0, 128
    %658 = vxpose.xlu0.c.b16.cont [6/8] 0, 128
    %659 = vxpose.xlu0.c.b16.cont [7/8] 0, 128
    %660 = vxpose.xlu0.c.b16.end [8/8] 0, 128
    %v661 = vpop.trf.xlu0
    %v662 = vpop.trf.xlu0
    %v663 = vpop.trf.xlu0
    %v664 = vpop.trf.xlu0
    %v665 = vpop.trf.xlu0
    %v666 = vpop.trf.xlu0
    %v667 = vpop.trf.xlu0
    %v668 = vpop.trf.xlu0
    %v670 = vsel %vm78, %v661, 0
    %v673 = vsel %vm78, %v662, 0
    %v676 = vsel %vm230, %v206, 0
    %678 = vmatprep.subr.bf16.mxu0 0
    %679 = vmatpush1.bf16.msra.mxu0 %v676
    %680 = vmatprep.subr.bf16.mxu0 0
    %681 = vmatpush1.bf16.msra.mxu0 0
    %682 = vmatprep.subr.bf16.mxu0 0
    %683 = vmatpush1.bf16.msra.mxu0 0
    %684 = vmatprep.subr.bf16.mxu0 0
    %685 = vmatpush1.bf16.msra.mxu0 0
    %686 = vmatprep.subr.bf16.mxu0 0
    %687 = vmatpush1.bf16.msra.mxu0 0
    %688 = vmatprep.subr.bf16.mxu0 0
    %689 = vmatpush1.bf16.msra.mxu0 0
    %690 = vmatprep.subr.bf16.mxu0 0
    %691 = vmatpush1.bf16.msra.mxu0 0
    %692 = vmatprep.subr.bf16.mxu0 0
    %693 = vmatpush1.bf16.msra.mxu0 0
    %694 = vmatprep.subr.bf16.mxu0 0
    %695 = vmatpush1.bf16.msra.mxu0 0
    %696 = vmatprep.subr.bf16.mxu0 0
    %697 = vmatpush1.bf16.msra.mxu0 0
    %698 = vmatprep.subr.bf16.mxu0 0
    %699 = vmatpush1.bf16.msra.mxu0 0
    %700 = vmatprep.subr.bf16.mxu0 0
    %701 = vmatpush1.bf16.msra.mxu0 0
    %702 = vmatprep.subr.bf16.mxu0 0
    %703 = vmatpush1.bf16.msra.mxu0 0
    %704 = vmatprep.subr.bf16.mxu0 0
    %705 = vmatpush1.bf16.msra.mxu0 0
    %706 = vmatprep.subr.bf16.mxu0 0
    %707 = vmatpush1.bf16.msra.mxu0 0
    %708 = vmatprep.subr.bf16.mxu0 0
    %709 = vmatpush1.bf16.msra.mxu0 0
    %710 = vmatprep.mubr.bf16.mxu0 0
    %711 = vmatmul.mubr.bf16.gmra.mrb[0].mxu0 %v670
    %v712 = vpop.f32.mrb[0].mxu0
    %v713 = vadd.f32 0.0, %v712
    %v714 = vpop.f32.mrb[0].mxu0
    %v715 = vpop.f32.mrb[0].mxu0
    %v716 = vadd.f32 0.0, %v715
    %v717 = vpop.f32.mrb[0].mxu0
    %718 = vmatprep.mubr.bf16.mxu0 0
    %719 = vmatmul.mubr.bf16.gmra.mrb[0].mxu0 %v673
    %v720 = vpop.f32.mrb[0].mxu0
    %v721 = vadd.f32 0.0, %v720
    %v722 = vpop.f32.mrb[0].mxu0
    %v723 = vpop.f32.mrb[0].mxu0
    %v724 = vadd.f32 0.0, %v723
    %v725 = vpop.f32.mrb[0].mxu0
    %726 = vdwg.mxu0
    %727 = vxpose.xlu0.c.b16.start [1/8] %v199, 128
    %728 = vxpose.xlu0.c.b16.cont [2/8] 0, 128
    %729 = vxpose.xlu0.c.b16.cont [3/8] 0, 128
    %730 = vxpose.xlu0.c.b16.cont [4/8] 0, 128
    %731 = vxpose.xlu0.c.b16.cont [5/8] 0, 128
    %732 = vxpose.xlu0.c.b16.cont [6/8] 0, 128
    %733 = vxpose.xlu0.c.b16.cont [7/8] 0, 128
    %734 = vxpose.xlu0.c.b16.end [8/8] 0, 128
    %v735 = vpop.trf.xlu0
    %v736 = vpop.trf.xlu0
    %v737 = vpop.trf.xlu0
    %v738 = vpop.trf.xlu0
    %v739 = vpop.trf.xlu0
    %v740 = vpop.trf.xlu0
    %v741 = vpop.trf.xlu0
    %v742 = vpop.trf.xlu0
    %v744 = vsel %vm78, %v735, 0
    %v747 = vsel %vm78, %v736, 0
    %v750 = vsel %vm230, %v207, 0
    %752 = vmatprep.subr.bf16.mxu0 0
    %753 = vmatpush1.bf16.msra.mxu0 %v750
    %754 = vmatprep.subr.bf16.mxu0 0
    %755 = vmatpush1.bf16.msra.mxu0 0
    %756 = vmatprep.subr.bf16.mxu0 0
    %757 = vmatpush1.bf16.msra.mxu0 0
    %758 = vmatprep.subr.bf16.mxu0 0
    %759 = vmatpush1.bf16.msra.mxu0 0
    %760 = vmatprep.subr.bf16.mxu0 0
    %761 = vmatpush1.bf16.msra.mxu0 0
    %762 = vmatprep.subr.bf16.mxu0 0
    %763 = vmatpush1.bf16.msra.mxu0 0
    %764 = vmatprep.subr.bf16.mxu0 0
    %765 = vmatpush1.bf16.msra.mxu0 0
    %766 = vmatprep.subr.bf16.mxu0 0
    %767 = vmatpush1.bf16.msra.mxu0 0
    %768 = vmatprep.subr.bf16.mxu0 0
    %769 = vmatpush1.bf16.msra.mxu0 0
    %770 = vmatprep.subr.bf16.mxu0 0
    %771 = vmatpush1.bf16.msra.mxu0 0
    %772 = vmatprep.subr.bf16.mxu0 0
    %773 = vmatpush1.bf16.msra.mxu0 0
    %774 = vmatprep.subr.bf16.mxu0 0
    %775 = vmatpush1.bf16.msra.mxu0 0
    %776 = vmatprep.subr.bf16.mxu0 0
    %777 = vmatpush1.bf16.msra.mxu0 0
    %778 = vmatprep.subr.bf16.mxu0 0
    %779 = vmatpush1.bf16.msra.mxu0 0
    %780 = vmatprep.subr.bf16.mxu0 0
    %781 = vmatpush1.bf16.msra.mxu0 0
    %782 = vmatprep.subr.bf16.mxu0 0
    %783 = vmatpush1.bf16.msra.mxu0 0
    %784 = vmatprep.mubr.bf16.mxu0 0
    %785 = vmatmul.mubr.bf16.gmra.mrb[0].mxu0 %v744
    %v786 = vpop.f32.mrb[0].mxu0
    %v787 = vadd.f32 0.0, %v786
    %v788 = vpop.f32.mrb[0].mxu0
    %v789 = vpop.f32.mrb[0].mxu0
    %v790 = vadd.f32 0.0, %v789
    %v791 = vpop.f32.mrb[0].mxu0
    %792 = vmatprep.mubr.bf16.mxu0 0
    %793 = vmatmul.mubr.bf16.gmra.mrb[0].mxu0 %v747
    %v794 = vpop.f32.mrb[0].mxu0
    %v795 = vadd.f32 0.0, %v794
    %v796 = vpop.f32.mrb[0].mxu0
    %v797 = vpop.f32.mrb[0].mxu0
    %v798 = vadd.f32 0.0, %v797
    %v799 = vpop.f32.mrb[0].mxu0
    %800 = vdwg.mxu0
    %vm801 = vcmp.gt.f32.partialorder %v269, 0.0
    %vm802 = vcmp.gt.f32.partialorder %v272, 0.0
    %vm803 = vcmp.gt.f32.partialorder %v277, 0.0
    %vm804 = vcmp.gt.f32.partialorder %v280, 0.0
    %vm805 = vcmp.gt.f32.partialorder %v343, 0.0
    %vm806 = vcmp.gt.f32.partialorder %v346, 0.0
    %vm807 = vcmp.gt.f32.partialorder %v351, 0.0
    %vm808 = vcmp.gt.f32.partialorder %v354, 0.0
    %vm809 = vcmp.gt.f32.partialorder %v417, 0.0
    %vm810 = vcmp.gt.f32.partialorder %v420, 0.0
    %vm811 = vcmp.gt.f32.partialorder %v425, 0.0
    %vm812 = vcmp.gt.f32.partialorder %v428, 0.0
    %vm813 = vcmp.gt.f32.partialorder %v491, 0.0
    %vm814 = vcmp.gt.f32.partialorder %v494, 0.0
    %vm815 = vcmp.gt.f32.partialorder %v499, 0.0
    %vm816 = vcmp.gt.f32.partialorder %v502, 0.0
    %vm817 = vcmp.gt.f32.partialorder %v565, 0.0
    %vm818 = vcmp.gt.f32.partialorder %v568, 0.0
    %vm819 = vcmp.gt.f32.partialorder %v573, 0.0
    %vm820 = vcmp.gt.f32.partialorder %v576, 0.0
    %vm821 = vcmp.gt.f32.partialorder %v639, 0.0
    %vm822 = vcmp.gt.f32.partialorder %v642, 0.0
    %vm823 = vcmp.gt.f32.partialorder %v647, 0.0
    %vm824 = vcmp.gt.f32.partialorder %v650, 0.0
    %vm825 = vcmp.gt.f32.partialorder %v713, 0.0
    %vm826 = vcmp.gt.f32.partialorder %v716, 0.0
    %vm827 = vcmp.gt.f32.partialorder %v721, 0.0
    %vm828 = vcmp.gt.f32.partialorder %v724, 0.0
    %vm829 = vcmp.gt.f32.partialorder %v787, 0.0
    %vm830 = vcmp.gt.f32.partialorder %v790, 0.0
    %vm831 = vcmp.gt.f32.partialorder %v795, 0.0
    %vm832 = vcmp.gt.f32.partialorder %v798, 0.0
    %v833 = vmul.f32 %v269, 0.2
    %v834 = vmul.f32 %v272, 0.2
    %v835 = vmul.f32 %v277, 0.2
    %v836 = vmul.f32 %v280, 0.2
    %v837 = vmul.f32 %v343, 0.2
    %v838 = vmul.f32 %v346, 0.2
    %v839 = vmul.f32 %v351, 0.2
    %v840 = vmul.f32 %v354, 0.2
    %v841 = vmul.f32 %v417, 0.2
    %v842 = vmul.f32 %v420, 0.2
    %v843 = vmul.f32 %v425, 0.2
    %v844 = vmul.f32 %v428, 0.2
    %v845 = vmul.f32 %v491, 0.2
    %v846 = vmul.f32 %v494, 0.2
    %v847 = vmul.f32 %v499, 0.2
    %v848 = vmul.f32 %v502, 0.2
    %v849 = vmul.f32 %v565, 0.2
    %v850 = vmul.f32 %v568, 0.2
    %v851 = vmul.f32 %v573, 0.2
    %v852 = vmul.f32 %v576, 0.2
    %v853 = vmul.f32 %v639, 0.2
    %v854 = vmul.f32 %v642, 0.2
    %v855 = vmul.f32 %v647, 0.2
    %v856 = vmul.f32 %v650, 0.2
    %v857 = vmul.f32 %v713, 0.2
    %v858 = vmul.f32 %v716, 0.2
    %v859 = vmul.f32 %v721, 0.2
    %v860 = vmul.f32 %v724, 0.2
    %v861 = vmul.f32 %v787, 0.2
    %v862 = vmul.f32 %v790, 0.2
    %v863 = vmul.f32 %v795, 0.2
    %v864 = vmul.f32 %v798, 0.2
    %v865 = vsel %vm801, %v269, %v833
    %v866 = vsel %vm802, %v272, %v834
    %v867 = vsel %vm803, %v277, %v835
    %v868 = vsel %vm804, %v280, %v836
    %v869 = vsel %vm805, %v343, %v837
    %v870 = vsel %vm806, %v346, %v838
    %v871 = vsel %vm807, %v351, %v839
    %v872 = vsel %vm808, %v354, %v840
    %v873 = vsel %vm809, %v417, %v841
    %v874 = vsel %vm810, %v420, %v842
    %v875 = vsel %vm811, %v425, %v843
    %v876 = vsel %vm812, %v428, %v844
    %v877 = vsel %vm813, %v491, %v845
    %v878 = vsel %vm814, %v494, %v846
    %v879 = vsel %vm815, %v499, %v847
    %v880 = vsel %vm816, %v502, %v848
    %v881 = vsel %vm817, %v565, %v849
    %v882 = vsel %vm818, %v568, %v850
    %v883 = vsel %vm819, %v573, %v851
    %v884 = vsel %vm820, %v576, %v852
    %v885 = vsel %vm821, %v639, %v853
    %v886 = vsel %vm822, %v642, %v854
    %v887 = vsel %vm823, %v647, %v855
    %v888 = vsel %vm824, %v650, %v856
    %v889 = vsel %vm825, %v713, %v857
    %v890 = vsel %vm826, %v716, %v858
    %v891 = vsel %vm827, %v721, %v859
    %v892 = vsel %vm828, %v724, %v860
    %v893 = vsel %vm829, %v787, %v861
    %v894 = vsel %vm830, %v790, %v862
    %v895 = vsel %vm831, %v795, %v863
    %v896 = vsel %vm832, %v798, %v864
    %v897 = vld [vmem:[#allocation8] sm:$0x1]
    %v899 = vlaneseq
    %v900 = vshrl.u32 %v899, 7
    %v901 = vsub.s32 0, %v900
    %v902 = vrot.slane %v897, %v901
    %v904 = vmul.f32 %v865, %v902
    %v905 = vmul.f32 %v866, %v902
    %v906 = vmul.f32 %v867, %v902
    %v907 = vmul.f32 %v868, %v902
    %v908 = vmul.f32 %v869, %v902
    %v909 = vmul.f32 %v870, %v902
    %v910 = vmul.f32 %v871, %v902
    %v911 = vmul.f32 %v872, %v902
    %v912 = vmul.f32 %v873, %v902
    %v913 = vmul.f32 %v874, %v902
    %v914 = vmul.f32 %v875, %v902
    %v915 = vmul.f32 %v876, %v902
    %v916 = vmul.f32 %v877, %v902
    %v917 = vmul.f32 %v878, %v902
    %v918 = vmul.f32 %v879, %v902
    %v919 = vmul.f32 %v880, %v902
    %v920 = vmul.f32 %v881, %v902
    %v921 = vmul.f32 %v882, %v902
    %v922 = vmul.f32 %v883, %v902
    %v923 = vmul.f32 %v884, %v902
    %v924 = vmul.f32 %v885, %v902
    %v925 = vmul.f32 %v886, %v902
    %v926 = vmul.f32 %v887, %v902
    %v927 = vmul.f32 %v888, %v902
    %v928 = vmul.f32 %v889, %v902
    %v929 = vmul.f32 %v890, %v902
    %v930 = vmul.f32 %v891, %v902
    %v931 = vmul.f32 %v892, %v902
    %v932 = vmul.f32 %v893, %v902
    %v933 = vmul.f32 %v894, %v902
    %v934 = vmul.f32 %v895, %v902
    %v935 = vmul.f32 %v896, %v902
    %vm936 = vcmask 261120
    %v937 = vsel %vm936, %v904, 0.0
    %938 = vadd.xlane.f32.xlu0 %v937
    %v939 = vpop.xlane.xlu0 %938
    %v940 = vsel %vm936, %v905, 0.0
    %941 = vadd.xlane.f32.xlu0 %v940
    %v942 = vpop.xlane.xlu0 %941
    %v943 = vsel %vm936, %v906, 0.0
    %944 = vadd.xlane.f32.xlu0 %v943
    %v945 = vpop.xlane.xlu0 %944
    %v946 = vsel %vm936, %v907, 0.0
    %947 = vadd.xlane.f32.xlu0 %v946
    %v948 = vpop.xlane.xlu0 %947
    %v949 = vsel %vm936, %v908, 0.0
    %950 = vadd.xlane.f32.xlu0 %v949
    %v951 = vpop.xlane.xlu0 %950
    %v952 = vsel %vm936, %v909, 0.0
    %953 = vadd.xlane.f32.xlu0 %v952
    %v954 = vpop.xlane.xlu0 %953
    %v955 = vsel %vm936, %v910, 0.0
    %956 = vadd.xlane.f32.xlu0 %v955
    %v957 = vpop.xlane.xlu0 %956
    %v958 = vsel %vm936, %v911, 0.0
    %959 = vadd.xlane.f32.xlu0 %v958
    %v960 = vpop.xlane.xlu0 %959
    %v961 = vsel %vm936, %v912, 0.0
    %962 = vadd.xlane.f32.xlu0 %v961
    %v963 = vpop.xlane.xlu0 %962
    %v964 = vsel %vm936, %v913, 0.0
    %965 = vadd.xlane.f32.xlu0 %v964
    %v966 = vpop.xlane.xlu0 %965
    %v967 = vsel %vm936, %v914, 0.0
    %968 = vadd.xlane.f32.xlu0 %v967
    %v969 = vpop.xlane.xlu0 %968
    %v970 = vsel %vm936, %v915, 0.0
    %971 = vadd.xlane.f32.xlu0 %v970
    %v972 = vpop.xlane.xlu0 %971
    %v973 = vsel %vm936, %v916, 0.0
    %974 = vadd.xlane.f32.xlu0 %v973
    %v975 = vpop.xlane.xlu0 %974
    %v976 = vsel %vm936, %v917, 0.0
    %977 = vadd.xlane.f32.xlu0 %v976
    %v978 = vpop.xlane.xlu0 %977
    %v979 = vsel %vm936, %v918, 0.0
    %980 = vadd.xlane.f32.xlu0 %v979
    %v981 = vpop.xlane.xlu0 %980
    %v982 = vsel %vm936, %v919, 0.0
    %983 = vadd.xlane.f32.xlu0 %v982
    %v984 = vpop.xlane.xlu0 %983
    %v985 = vsel %vm936, %v920, 0.0
    %986 = vadd.xlane.f32.xlu0 %v985
    %v987 = vpop.xlane.xlu0 %986
    %v988 = vsel %vm936, %v921, 0.0
    %989 = vadd.xlane.f32.xlu0 %v988
    %v990 = vpop.xlane.xlu0 %989
    %v991 = vsel %vm936, %v922, 0.0
    %992 = vadd.xlane.f32.xlu0 %v991
    %v993 = vpop.xlane.xlu0 %992
    %v994 = vsel %vm936, %v923, 0.0
    %995 = vadd.xlane.f32.xlu0 %v994
    %v996 = vpop.xlane.xlu0 %995
    %v997 = vsel %vm936, %v924, 0.0
    %998 = vadd.xlane.f32.xlu0 %v997
    %v999 = vpop.xlane.xlu0 %998
    %v1000 = vsel %vm936, %v925, 0.0
    %1001 = vadd.xlane.f32.xlu0 %v1000
    %v1002 = vpop.xlane.xlu0 %1001
    %v1003 = vsel %vm936, %v926, 0.0
    %1004 = vadd.xlane.f32.xlu0 %v1003
    %v1005 = vpop.xlane.xlu0 %1004
    %v1006 = vsel %vm936, %v927, 0.0
    %1007 = vadd.xlane.f32.xlu0 %v1006
    %v1008 = vpop.xlane.xlu0 %1007
    %v1009 = vsel %vm936, %v928, 0.0
    %1010 = vadd.xlane.f32.xlu0 %v1009
    %v1011 = vpop.xlane.xlu0 %1010
    %v1012 = vsel %vm936, %v929, 0.0
    %1013 = vadd.xlane.f32.xlu0 %v1012
    %v1014 = vpop.xlane.xlu0 %1013
    %v1015 = vsel %vm936, %v930, 0.0
    %1016 = vadd.xlane.f32.xlu0 %v1015
    %v1017 = vpop.xlane.xlu0 %1016
    %v1018 = vsel %vm936, %v931, 0.0
    %1019 = vadd.xlane.f32.xlu0 %v1018
    %v1020 = vpop.xlane.xlu0 %1019
    %v1021 = vsel %vm936, %v932, 0.0
    %1022 = vadd.xlane.f32.xlu0 %v1021
    %v1023 = vpop.xlane.xlu0 %1022
    %v1024 = vsel %vm936, %v933, 0.0
    %1025 = vadd.xlane.f32.xlu0 %v1024
    %v1026 = vpop.xlane.xlu0 %1025
    %v1027 = vsel %vm936, %v934, 0.0
    %1028 = vadd.xlane.f32.xlu0 %v1027
    %v1029 = vpop.xlane.xlu0 %1028
    %v1030 = vsel %vm936, %v935, 0.0
    %1031 = vadd.xlane.f32.xlu0 %v1030
    %v1032 = vpop.xlane.xlu0 %1031
    %v1033 = vpack.c.bf16 %v942, %v939
    %v1034 = vpack.c.bf16 %v948, %v945
    %v1035 = vpack.c.bf16 %v954, %v951
    %v1036 = vpack.c.bf16 %v960, %v957
    %v1037 = vpack.c.bf16 %v966, %v963
    %v1038 = vpack.c.bf16 %v972, %v969
    %v1039 = vpack.c.bf16 %v978, %v975
    %v1040 = vpack.c.bf16 %v984, %v981
    %v1041 = vpack.c.bf16 %v990, %v987
    %v1042 = vpack.c.bf16 %v996, %v993
    %v1043 = vpack.c.bf16 %v1002, %v999
    %v1044 = vpack.c.bf16 %v1008, %v1005
    %v1045 = vpack.c.bf16 %v1014, %v1011
    %v1046 = vpack.c.bf16 %v1020, %v1017
    %v1047 = vpack.c.bf16 %v1026, %v1023
    %v1048 = vpack.c.bf16 %v1032, %v1029
    %v1049 = vld [vmem:[%s5] sm:$0xf]
    %v1050 = vld [vmem:[%s5 + $0x4] sm:$0xf]
    %v1051 = vld [vmem:[%s5 + $0x8] sm:$0xf]
    %v1052 = vld [vmem:[%s5 + $0xc] sm:$0xf]
    %v1053 = vld [vmem:[%s6] sm:$0x1]
    %v1055 = vlaneseq
    %v1056 = vshrl.u32 %v1055, 7
    %v1057 = vsub.s32 0, %v1056
    %v1058 = vrot.slane %v1053, %v1057
    %v1076 = vunpack.c.l.b16 %v1033
    %v1077 = vunpack.c.h.b16 %v1033
    %v1078 = vunpack.c.l.b16 %v1034
    %v1079 = vunpack.c.h.b16 %v1034
    %v1080 = vunpack.c.l.b16 %v1035
    %v1081 = vunpack.c.h.b16 %v1035
    %v1082 = vunpack.c.l.b16 %v1036
    %v1083 = vunpack.c.h.b16 %v1036
    %v1084 = vunpack.c.l.b16 %v1037
    %v1085 = vunpack.c.h.b16 %v1037
    %v1086 = vunpack.c.l.b16 %v1038
    %v1087 = vunpack.c.h.b16 %v1038
    %v1088 = vunpack.c.l.b16 %v1039
    %v1089 = vunpack.c.h.b16 %v1039
    %v1090 = vunpack.c.l.b16 %v1040
    %v1091 = vunpack.c.h.b16 %v1040
    %v1092 = vunpack.c.l.b16 %v1041
    %v1093 = vunpack.c.h.b16 %v1041
    %v1094 = vunpack.c.l.b16 %v1042
    %v1095 = vunpack.c.h.b16 %v1042
    %v1096 = vunpack.c.l.b16 %v1043
    %v1097 = vunpack.c.h.b16 %v1043
    %v1098 = vunpack.c.l.b16 %v1044
    %v1099 = vunpack.c.h.b16 %v1044
    %v1100 = vunpack.c.l.b16 %v1045
    %v1101 = vunpack.c.h.b16 %v1045
    %v1102 = vunpack.c.l.b16 %v1046
    %v1103 = vunpack.c.h.b16 %v1046
    %v1104 = vunpack.c.l.b16 %v1047
    %v1105 = vunpack.c.h.b16 %v1047
    %v1106 = vunpack.c.l.b16 %v1048
    %v1107 = vunpack.c.h.b16 %v1048
    %v1108 = vlaneseq
    %v1109 = vand.u32 %v1108, 127
    %v1110 = vlaneseq
    %v1111 = vshrl.u32 %v1110, 7
    %v1112 = vsub.s32 %v1109, %v1111
    %v1113 = vrot.slane %v1076, %v1112
    %v1114 = vadd.s32 %v1109, 4294967288
    %v1115 = vlaneseq
    %v1116 = vshrl.u32 %v1115, 7
    %v1117 = vsub.s32 %v1114, %v1116
    %v1118 = vrot.slane %v1077, %v1117
    %vm1119 = vcmask 130112
    %v1120 = vsel %vm1119, %v1118, %v1113
    %v1121 = vadd.s32 %v1109, 4294967280
    %v1122 = vlaneseq
    %v1123 = vshrl.u32 %v1122, 7
    %v1124 = vsub.s32 %v1121, %v1123
    %v1125 = vrot.slane %v1078, %v1124
    %vm1126 = vcmask 195712
    %v1127 = vsel %vm1126, %v1125, %v1120
    %v1128 = vadd.s32 %v1109, 4294967272
    %v1129 = vlaneseq
    %v1130 = vshrl.u32 %v1129, 7
    %v1131 = vsub.s32 %v1128, %v1130
    %v1132 = vrot.slane %v1079, %v1131
    %vm1133 = vcmask 261312
    %v1134 = vsel %vm1133, %v1132, %v1127
    %v1135 = vlaneseq
    %v1136 = vshrl.u32 %v1135, 7
    %v1137 = vsub.s32 %v1109, %v1136
    %v1138 = vrot.slane %v1080, %v1137
    %v1139 = vlaneseq
    %v1140 = vshrl.u32 %v1139, 7
    %v1141 = vsub.s32 %v1114, %v1140
    %v1142 = vrot.slane %v1081, %v1141
    %v1143 = vsel %vm1119, %v1142, %v1138
    %v1144 = vlaneseq
    %v1145 = vshrl.u32 %v1144, 7
    %v1146 = vsub.s32 %v1121, %v1145
    %v1147 = vrot.slane %v1082, %v1146
    %v1148 = vsel %vm1126, %v1147, %v1143
    %v1149 = vlaneseq
    %v1150 = vshrl.u32 %v1149, 7
    %v1151 = vsub.s32 %v1128, %v1150
    %v1152 = vrot.slane %v1083, %v1151
    %v1153 = vsel %vm1133, %v1152, %v1148
    %v1154 = vlaneseq
    %v1155 = vshrl.u32 %v1154, 7
    %v1156 = vsub.s32 %v1109, %v1155
    %v1157 = vrot.slane %v1084, %v1156
    %v1158 = vlaneseq
    %v1159 = vshrl.u32 %v1158, 7
    %v1160 = vsub.s32 %v1114, %v1159
    %v1161 = vrot.slane %v1085, %v1160
    %v1162 = vsel %vm1119, %v1161, %v1157
    %v1163 = vlaneseq
    %v1164 = vshrl.u32 %v1163, 7
    %v1165 = vsub.s32 %v1121, %v1164
    %v1166 = vrot.slane %v1086, %v1165
    %v1167 = vsel %vm1126, %v1166, %v1162
    %v1168 = vlaneseq
    %v1169 = vshrl.u32 %v1168, 7
    %v1170 = vsub.s32 %v1128, %v1169
    %v1171 = vrot.slane %v1087, %v1170
    %v1172 = vsel %vm1133, %v1171, %v1167
    %v1173 = vlaneseq
    %v1174 = vshrl.u32 %v1173, 7
    %v1175 = vsub.s32 %v1109, %v1174
    %v1176 = vrot.slane %v1088, %v1175
    %v1177 = vlaneseq
    %v1178 = vshrl.u32 %v1177, 7
    %v1179 = vsub.s32 %v1114, %v1178
    %v1180 = vrot.slane %v1089, %v1179
    %v1181 = vsel %vm1119, %v1180, %v1176
    %v1182 = vlaneseq
    %v1183 = vshrl.u32 %v1182, 7
    %v1184 = vsub.s32 %v1121, %v1183
    %v1185 = vrot.slane %v1090, %v1184
    %v1186 = vsel %vm1126, %v1185, %v1181
    %v1187 = vlaneseq
    %v1188 = vshrl.u32 %v1187, 7
    %v1189 = vsub.s32 %v1128, %v1188
    %v1190 = vrot.slane %v1091, %v1189
    %v1191 = vsel %vm1133, %v1190, %v1186
    %v1192 = vlaneseq
    %v1193 = vshrl.u32 %v1192, 7
    %v1194 = vsub.s32 %v1109, %v1193
    %v1195 = vrot.slane %v1092, %v1194
    %v1196 = vlaneseq
    %v1197 = vshrl.u32 %v1196, 7
    %v1198 = vsub.s32 %v1114, %v1197
    %v1199 = vrot.slane %v1093, %v1198
    %v1200 = vsel %vm1119, %v1199, %v1195
    %v1201 = vlaneseq
    %v1202 = vshrl.u32 %v1201, 7
    %v1203 = vsub.s32 %v1121, %v1202
    %v1204 = vrot.slane %v1094, %v1203
    %v1205 = vsel %vm1126, %v1204, %v1200
    %v1206 = vlaneseq
    %v1207 = vshrl.u32 %v1206, 7
    %v1208 = vsub.s32 %v1128, %v1207
    %v1209 = vrot.slane %v1095, %v1208
    %v1210 = vsel %vm1133, %v1209, %v1205
    %v1211 = vlaneseq
    %v1212 = vshrl.u32 %v1211, 7
    %v1213 = vsub.s32 %v1109, %v1212
    %v1214 = vrot.slane %v1096, %v1213
    %v1215 = vlaneseq
    %v1216 = vshrl.u32 %v1215, 7
    %v1217 = vsub.s32 %v1114, %v1216
    %v1218 = vrot.slane %v1097, %v1217
    %v1219 = vsel %vm1119, %v1218, %v1214
    %v1220 = vlaneseq
    %v1221 = vshrl.u32 %v1220, 7
    %v1222 = vsub.s32 %v1121, %v1221
    %v1223 = vrot.slane %v1098, %v1222
    %v1224 = vsel %vm1126, %v1223, %v1219
    %v1225 = vlaneseq
    %v1226 = vshrl.u32 %v1225, 7
    %v1227 = vsub.s32 %v1128, %v1226
    %v1228 = vrot.slane %v1099, %v1227
    %v1229 = vsel %vm1133, %v1228, %v1224
    %v1230 = vlaneseq
    %v1231 = vshrl.u32 %v1230, 7
    %v1232 = vsub.s32 %v1109, %v1231
    %v1233 = vrot.slane %v1100, %v1232
    %v1234 = vlaneseq
    %v1235 = vshrl.u32 %v1234, 7
    %v1236 = vsub.s32 %v1114, %v1235
    %v1237 = vrot.slane %v1101, %v1236
    %v1238 = vsel %vm1119, %v1237, %v1233
    %v1239 = vlaneseq
    %v1240 = vshrl.u32 %v1239, 7
    %v1241 = vsub.s32 %v1121, %v1240
    %v1242 = vrot.slane %v1102, %v1241
    %v1243 = vsel %vm1126, %v1242, %v1238
    %v1244 = vlaneseq
    %v1245 = vshrl.u32 %v1244, 7
    %v1246 = vsub.s32 %v1128, %v1245
    %v1247 = vrot.slane %v1103, %v1246
    %v1248 = vsel %vm1133, %v1247, %v1243
    %v1249 = vlaneseq
    %v1250 = vshrl.u32 %v1249, 7
    %v1251 = vsub.s32 %v1109, %v1250
    %v1252 = vrot.slane %v1104, %v1251
    %v1253 = vlaneseq
    %v1254 = vshrl.u32 %v1253, 7
    %v1255 = vsub.s32 %v1114, %v1254
    %v1256 = vrot.slane %v1105, %v1255
    %v1257 = vsel %vm1119, %v1256, %v1252
    %v1258 = vlaneseq
    %v1259 = vshrl.u32 %v1258, 7
    %v1260 = vsub.s32 %v1121, %v1259
    %v1261 = vrot.slane %v1106, %v1260
    %v1262 = vsel %vm1126, %v1261, %v1257
    %v1263 = vlaneseq
    %v1264 = vshrl.u32 %v1263, 7
    %v1265 = vsub.s32 %v1128, %v1264
    %v1266 = vrot.slane %v1107, %v1265
    %v1267 = vsel %vm1133, %v1266, %v1262
    %vm1268 = vcmask 1041409
    %v1269 = vsel %vm1268, %v1153, %v1134
    %vm1270 = vcmask 1042434
    %v1271 = vsel %vm1270, %v1172, %v1269
    %vm1272 = vcmask 1043459
    %v1273 = vsel %vm1272, %v1191, %v1271
    %vm1274 = vcmask 1044484
    %v1275 = vsel %vm1274, %v1210, %v1273
    %vm1276 = vcmask 1045509
    %v1277 = vsel %vm1276, %v1229, %v1275
    %vm1278 = vcmask 1046534
    %v1279 = vsel %vm1278, %v1248, %v1277
    %vm1280 = vcmask 1047559
    %v1281 = vsel %vm1280, %v1267, %v1279
    %v1282 = vpack.c.b16 %v1281, %v1281
    %v1287 = vunpack.c.l.b16 %v1049
    %v1288 = vunpack.c.l.b16 %v1050
    %v1289 = vunpack.c.l.b16 %v1051
    %v1290 = vunpack.c.l.b16 %v1052
    %v1291 = vpack.c.b16 %v1288, %v1287
    %v1292 = vpack.c.b16 %v1290, %v1289
    %v1296 = vsel %vm936, %v1282, 0
    %1298 = vmatprep.subr.bf16.mxu0 0
    %1299 = vmatpush1.bf16.msra.mxu0 %v1291
    %1300 = vmatprep.subr.bf16.mxu0 0
    %1301 = vmatpush1.bf16.msra.mxu0 %v1292
    %1302 = vmatprep.subr.bf16.mxu0 0
    %1303 = vmatpush1.bf16.msra.mxu0 0
    %1304 = vmatprep.subr.bf16.mxu0 0
    %1305 = vmatpush1.bf16.msra.mxu0 0
    %1306 = vmatprep.subr.bf16.mxu0 0
    %1307 = vmatpush1.bf16.msra.mxu0 0
    %1308 = vmatprep.subr.bf16.mxu0 0
    %1309 = vmatpush1.bf16.msra.mxu0 0
    %1310 = vmatprep.subr.bf16.mxu0 0
    %1311 = vmatpush1.bf16.msra.mxu0 0
    %1312 = vmatprep.subr.bf16.mxu0 0
    %1313 = vmatpush1.bf16.msra.mxu0 0
    %1314 = vmatprep.subr.bf16.mxu0 0
    %1315 = vmatpush1.bf16.msra.mxu0 0
    %1316 = vmatprep.subr.bf16.mxu0 0
    %1317 = vmatpush1.bf16.msra.mxu0 0
    %1318 = vmatprep.subr.bf16.mxu0 0
    %1319 = vmatpush1.bf16.msra.mxu0 0
    %1320 = vmatprep.subr.bf16.mxu0 0
    %1321 = vmatpush1.bf16.msra.mxu0 0
    %1322 = vmatprep.subr.bf16.mxu0 0
    %1323 = vmatpush1.bf16.msra.mxu0 0
    %1324 = vmatprep.subr.bf16.mxu0 0
    %1325 = vmatpush1.bf16.msra.mxu0 0
    %1326 = vmatprep.subr.bf16.mxu0 0
    %1327 = vmatpush1.bf16.msra.mxu0 0
    %1328 = vmatprep.subr.bf16.mxu0 0
    %1329 = vmatpush1.bf16.msra.mxu0 0
    %1330 = vmatprep.mubr.bf16.mxu0 0
    %1331 = vmatmul.mubr.bf16.gmra.mrb[0].mxu0 %v1296
    %v1332 = vpop.f32.mrb[0].mxu0
    %v1333 = vadd.f32 %v1058, %v1332
    %v1334 = vpop.f32.mrb[0].mxu0
    %v1335 = vpop.f32.mrb[0].mxu0
    %v1336 = vpop.f32.mrb[0].mxu0
    %1337 = vdwg.mxu0
    %1338 = vst.msk [vmem:[#allocation10] sm:$0xff] %vm936, %v1333
    // Predicated region
    $region46: #{tpu_custom_call.1} parent=1 // pred_check
      _
    $region47: #{tpu_custom_call.1} parent=1 // pred_check_branch
      %1340 = sbr.rel (0) target = $region49
    $region48: #{tpu_custom_call.1} parent=1 // pred_region
      %s1342 = ssub.s32 128, 32
      %1343 = vsyncadd [#allocation4], %s1342
      %s1344 = sshll.u32 [#allocation10], 4
      %s1345 = int_to_ptr.vmem [resolvable:$true] %s1344
      %1350 = dma.vmem_to_hbm [thread:$0]  %s1345, 32, %s7, [#allocation4], 32, 32, 2
    $region49: #{tpu_custom_call.1} parent=1 // pred_fallthru
      _
    // Predicated region
    $region50: #{tpu_custom_call.1} parent=1 // pred_check
      _
    $region51: #{tpu_custom_call.1} parent=1 // pred_check_branch
      %1352 = sbr.rel (0) target = $region53
    $region52: #{tpu_custom_call.1} parent=1 // pred_region
      %1353 = dma.done [#allocation4], 128
    $region53: #{tpu_custom_call.1} parent=1 // pred_fallthru
      _
    %1354 = vsyncpa [#allocation3], 1
    %1355 = vsyncpa [#allocation6], 1
    %1356 = vsyncpa [#allocation9], 1
    %1357 = vsyncpa [#allocation4], 1

</llo_original>
